<compile_context>
chip_gen: v6e
topology: v6e:2x2x1
jax: 0.10.0
libtpu: 0.0.40
codegen_flags: <defaults>
</compile_context>

<pallas_src>
import functools

import jax
import jax.numpy as jnp
from jax.experimental import pallas as pl
from jax.experimental.pallas import tpu as pltpu

_LANE = 128
_FAST_PATH_BYTES = 256 << 10          # below this, pure-XLA path wins
_DEFAULT_BLOCK_BYTES = 2 << 20        # lane-padded VMEM per input buffer


def _cdiv(a, b):
    return -(-a // b)


def _round_up(a, b):
    return _cdiv(a, b) * b


def _make_partial_sums_kernel(T, tile, n_rows, needs_row_mask):
    """Kernel producing 4 partial L1 sums for one (tile, T*6) block.

    out_ref (1, 4) SMEM row:
      [0] sum |pred - targ|       over translation dims (pose dim % 6 < 3)
      [1] sum |pred - targ|       over rotation    dims
      [2] sum |vos(pred)-vos(targ)| over translation dims
      [3] sum |vos(pred)-vos(targ)| over rotation    dims
    with vos(x)[t] = x[t+1] - x[t]  (calc_vos_simple).
    """
    T6 = 6 * T
    VO = T6 - 6

    def kernel(pred_ref, targ_ref, out_ref):
        d = pred_ref[...].astype(jnp.float32) - targ_ref[...].astype(jnp.float32)

        if needs_row_mask:  # static: only emitted when the last block is ragged
            row = jax.lax.broadcasted_iota(jnp.int32, (tile, 1), 0)
            valid = (pl.program_id(0) * tile + row) < n_rows
            d = jnp.where(valid, d, 0.0)

        # Absolute-pose term: per-lane column sums first (cheap VPU adds),
        # then lane-mask a single (1, T6) vreg.
        col = jnp.sum(jnp.abs(d), axis=0, keepdims=True)           # (1, T6)
        lane = jax.lax.broadcasted_iota(jnp.int32, (1, T6), 1)
        trans = (lane % 6) < 3
        s_all = jnp.sum(col)
        s_t = jnp.sum(jnp.where(trans, col, 0.0))
        out_ref[0, 0] = s_t
        out_ref[0, 1] = s_all - s_t

        # Relative-pose (VO) term: d[t+1]-d[t] == lane shift by 6 of d.
        vd = jnp.abs(d[:, 6:] - d[:, :VO])                          # (tile, VO)
        vcol = jnp.sum(vd, axis=0, keepdims=True)                   # (1, VO)
        vlane = jax.lax.broadcasted_iota(jnp.int32, (1, VO), 1)
        vtrans = (vlane % 6) < 3
        v_all = jnp.sum(vcol)
        v_t = jnp.sum(jnp.where(vtrans, vcol, 0.0))
        out_ref[0, 2] = v_t
        out_ref[0, 3] = v_all - v_t

    return kernel


def _choose_tile(n_rows, t6, itemsize, max_block_bytes):
    """Row tile + grid.  Blocks grow to the VMEM budget (lane-padded);
    a multi-block grid is rounded to an even block count for v7x megacore."""
    lanes_padded = _round_up(t6, _LANE)
    bytes_per_row = lanes_padded * itemsize
    max_rows = max(8, (max_block_bytes // bytes_per_row) // 8 * 8)
    if n_rows <= max_rows:
        return n_rows, 1                   # one big block, zero per-step overhead
    grid = _cdiv(n_rows, max_rows)
    if grid % 2:
        grid += 1                          # balanced shards across 2 TensorCores
    tile = _round_up(_cdiv(n_rows, grid), 8)
    grid = _cdiv(n_rows, tile)
    return tile, grid


def _pallas_partial_sums(pred, targ, max_block_bytes):
    N, T, _ = pred.shape
    T6 = 6 * T
    x = pred.reshape(N, T6)                # free (row-major) relayout
    y = targ.reshape(N, T6)
    tile, grid = _choose_tile(N, T6, x.dtype.itemsize, max_block_bytes)
    kernel = _make_partial_sums_kernel(T, tile, N, needs_row_mask=(tile * grid != N))

    partials = pl.pallas_call(
        kernel,
        out_shape=jax.ShapeDtypeStruct((grid, 4), jnp.float32),
        grid=(grid,),
        in_specs=[
            pl.BlockSpec((tile, T6), lambda i: (i, 0)),
            pl.BlockSpec((tile, T6), lambda i: (i, 0)),
        ],
        out_specs=pl.BlockSpec((1, 4), lambda i: (i, 0),
                               memory_space=pltpu.MemorySpace.SMEM),
        compiler_params=pltpu.CompilerParams(
            dimension_semantics=("parallel",),
            vmem_limit_bytes=32 << 20),
    )(x, y)
    return jnp.sum(partials, axis=0)


def _jax_partial_sums(pred, targ):
    """Fused XLA fast path for tiny problems (fixed-overhead dominated)."""
    d = (pred.astype(jnp.float32) - targ.astype(jnp.float32))
    ad = jnp.abs(d)
    vd = jnp.abs(d[:, 1:, :] - d[:, :-1, :])
    return jnp.stack([jnp.sum(ad[..., :3]), jnp.sum(ad[..., 3:]),
                      jnp.sum(vd[..., :3]), jnp.sum(vd[..., 3:])])


@functools.partial(jax.jit, static_argnames=("q_loss_weight", "vo_q_loss_weight",
                                              "use_pallas", "max_block_bytes"))
def mapnet_criterion(pred, targ, sax, saq, srx, srq,
                     q_loss_weight=1.0, vo_q_loss_weight=1.0,
                     use_pallas=None, max_block_bytes=_DEFAULT_BLOCK_BYTES):
    """pred, targ: (N, T, 6). Returns (loss, loss_meta) like MapNetCriterion.forward.

    loss_meta values are returned as JAX scalars (no .item() host sync).
    """
    N, T, D = pred.shape
    assert D == 6 and T >= 2

    if use_pallas is None:
        total_bytes = 2 * N * T * 6 * pred.dtype.itemsize
        use_pallas = total_bytes >= _FAST_PATH_BYTES

    if use_pallas:
        sums = _pallas_partial_sums(pred, targ, max_block_bytes)
    else:
        sums = _jax_partial_sums(pred, targ)

    n_abs = jnp.float32(N * T * 3)          # elements per trans / rot slab
    n_vo = jnp.float32(N * (T - 1) * 3)
    t_loss = sums[0] / n_abs                # L1Loss(reduction='mean') on [:, :3]
    q_loss = q_loss_weight * (sums[1] / n_abs)
    vo_t_loss = sums[2] / n_vo
    vo_q_loss = vo_q_loss_weight * (sums[3] / n_vo)

    abs_loss = jnp.exp(-sax) * t_loss + sax + jnp.exp(-saq) * q_loss + saq
    vo_loss = jnp.exp(-srx) * vo_t_loss + srx + jnp.exp(-srq) * vo_q_loss + srq
    loss = abs_loss + vo_loss

    loss_meta = {
        "t_loss": t_loss,
        "q_loss": q_loss,
        "vo_t_loss": vo_t_loss,
        "vo_q_loss": vo_q_loss,
    }
    return loss, loss_meta


def _reference(pred, targ, sax, saq, srx, srq, qw=1.0, vqw=1.0):
    """Pure-JAX reference mirroring the PyTorch code."""
    p = pred.reshape(-1, 6)
    t = targ.reshape(-1, 6)
    l1 = lambda a, b: jnp.mean(jnp.abs(a - b))
    t_loss = l1(p[:, :3], t[:, :3])
    q_loss = qw * l1(p[:, 3:], t[:, 3:])
    abs_loss = jnp.exp(-sax) * t_loss + sax + jnp.exp(-saq) * q_loss + saq
    pv = (pred[:, 1:, :] - pred[:, :-1, :]).reshape(-1, 6)
    tv = (targ[:, 1:, :] - targ[:, :-1, :]).reshape(-1, 6)
    vo_t = l1(pv[:, :3], tv[:, :3])
    vo_q = vqw * l1(pv[:, 3:], tv[:, 3:])
    vo_loss = jnp.exp(-srx) * vo_t + srx + jnp.exp(-srq) * vo_q + srq
    return abs_loss + vo_loss, (t_loss, q_loss, vo_t, vo_q)


if __name__ == "__main__":
    key = jax.random.PRNGKey(0)

    def check(N, T, use_pallas, max_block_bytes=_DEFAULT_BLOCK_BYTES, tol=1e-4):
        k1, k2 = jax.random.split(jax.random.fold_in(key, N * 1000 + T))
        pred = jax.random.normal(k1, (N, T, 6), dtype=jnp.float32)
        targ = jax.random.normal(k2, (N, T, 6), dtype=jnp.float32)

        # Deterministic parameters per __init__ defaults (learn_beta/gamma=False).
        sax = jnp.float32(0.0)
        saq = jnp.float32(0.0)
        srx = jnp.float32(0.0)
        srq = jnp.float32(0.0)

        loss, meta = mapnet_criterion(pred, targ, sax, saq, srx, srq,
                                      q_loss_weight=1.0, vo_q_loss_weight=1.0,
                                      use_pallas=use_pallas,
                                      max_block_bytes=max_block_bytes)
        loss = jax.block_until_ready(loss)
        meta = jax.tree_util.tree_map(jax.block_until_ready, meta)

        ref_loss, (rt, rq, rvt, rvq) = _reference(pred, targ, sax, saq, srx, srq)
        assert jnp.allclose(loss, ref_loss, rtol=tol, atol=tol), (loss, ref_loss)
        assert jnp.allclose(meta["t_loss"], rt, rtol=tol, atol=tol)
        assert jnp.allclose(meta["q_loss"], rq, rtol=tol, atol=tol)
        assert jnp.allclose(meta["vo_t_loss"], rvt, rtol=tol, atol=tol)
        assert jnp.allclose(meta["vo_q_loss"], rvq, rtol=tol, atol=tol)

    # Typical small MapNet shape: single-block Pallas kernel (tile == N).
    check(2, 8, use_pallas=True)
    # Same shape via the auto small-problem fast path (no Pallas).
    check(2, 8, use_pallas=None)
    # Larger batch: single big block (no transpose / pad, one HBM pass).
    check(1300, 5, use_pallas=True)
    # Force a multi-block "parallel" grid with a ragged tail (row-mask path).
    check(1300, 5, use_pallas=True, max_block_bytes=64 << 10)

    print("KERNEL_OK")
</pallas_src>

<mosaic_0001>
module attributes {stable_mosaic.version = 11 : i64} {
  func.func @kernel(%arg0: i32, %arg1: memref<2x48xf32, #tpu.memory_space<vmem>>, %arg2: memref<2x48xf32, #tpu.memory_space<vmem>>, %arg3: memref<1x4xf32, #tpu.memory_space<smem>>) attributes {dimension_semantics = [#tpu.dimension_semantics<parallel>], iteration_bounds = array<i64: 1>, scalar_prefetch = 0 : i64, scratch_operands = 0 : i64, tpu.core_type = #tpu.core_type<tc>, window_params = [{transform_indices = @transform_0, window_bounds = array<i64: 2, 48>}, {transform_indices = @transform_1, window_bounds = array<i64: 2, 48>}, {transform_indices = @transform_2, window_bounds = array<i64: 1, 4>}]} {
    %c0 = arith.constant 0 : index
    %c0_0 = arith.constant 0 : index
    %0 = vector.load %arg1[%c0, %c0_0] : memref<2x48xf32, #tpu.memory_space<vmem>>, vector<2x48xf32>
    %c0_1 = arith.constant 0 : index
    %c0_2 = arith.constant 0 : index
    %1 = vector.load %arg2[%c0_1, %c0_2] : memref<2x48xf32, #tpu.memory_space<vmem>>, vector<2x48xf32>
    %2 = arith.subf %0, %1 : vector<2x48xf32>
    %3 = math.absf %2 : vector<2x48xf32>
    %cst = arith.constant dense<0.000000e+00> : vector<48xf32>
    %4 = vector.multi_reduction <add>, %3, %cst [0] : vector<2x48xf32> to vector<48xf32>
    %5 = vector.shape_cast %4 : vector<48xf32> to vector<1x48xf32>
    %6 = tpu.iota {dimensions = array<i32: 1>} : vector<1x48xi32>
    %c6_i32 = arith.constant 6 : i32
    %c0_i32 = arith.constant 0 : i32
    %7 = arith.cmpi eq, %c6_i32, %c0_i32 : i32
    %c1_i32 = arith.constant 1 : i32
    %8 = arith.select %7, %c1_i32, %c6_i32 : i32
    %9 = vector.broadcast %8 : i32 to vector<1x48xi32>
    %10 = arith.remsi %6, %9 : vector<1x48xi32>
    %c0_i32_3 = arith.constant 0 : i32
    %11 = vector.broadcast %c0_i32_3 : i32 to vector<1x48xi32>
    %12 = arith.cmpi ne, %10, %11 : vector<1x48xi32>
    %c0_i32_4 = arith.constant 0 : i32
    %13 = vector.broadcast %c0_i32_4 : i32 to vector<1x48xi32>
    %14 = arith.cmpi slt, %10, %13 : vector<1x48xi32>
    %c0_i32_5 = arith.constant 0 : i32
    %15 = arith.cmpi slt, %8, %c0_i32_5 : i32
    %16 = vector.broadcast %15 : i1 to vector<1x48xi1>
    %17 = vector.broadcast %16 : vector<1x48xi1> to vector<1x48xi1>
    %18 = arith.xori %14, %17 : vector<1x48xi1>
    %19 = arith.andi %18, %12 : vector<1x48xi1>
    %20 = vector.broadcast %8 : i32 to vector<1x48xi32>
    %21 = arith.addi %10, %20 : vector<1x48xi32>
    %22 = arith.select %19, %21, %10 : vector<1x48xi1>, vector<1x48xi32>
    %c3_i32 = arith.constant 3 : i32
    %23 = vector.broadcast %c3_i32 : i32 to vector<1x48xi32>
    %24 = arith.cmpi slt, %22, %23 : vector<1x48xi32>
    %25 = vector.shape_cast %5 : vector<1x48xf32> to vector<1x1x48xf32>
    %cst_6 = arith.constant dense<0.000000e+00> : vector<1xf32>
    %26 = vector.multi_reduction <add>, %25, %cst_6 [1, 2] : vector<1x1x48xf32> to vector<1xf32>
    %27 = vector.shape_cast %26 : vector<1xf32> to vector<1x1x1xf32>
    %28 = vector.extract %27[0, 0, 0] : f32 from vector<1x1x1xf32>
    %cst_7 = arith.constant 0.000000e+00 : f32
    %29 = vector.broadcast %cst_7 : f32 to vector<1x48xf32>
    %30 = arith.select %24, %5, %29 : vector<1x48xi1>, vector<1x48xf32>
    %31 = vector.shape_cast %30 : vector<1x48xf32> to vector<1x1x48xf32>
    %cst_8 = arith.constant dense<0.000000e+00> : vector<1xf32>
    %32 = vector.multi_reduction <add>, %31, %cst_8 [1, 2] : vector<1x1x48xf32> to vector<1xf32>
    %33 = vector.shape_cast %32 : vector<1xf32> to vector<1x1x1xf32>
    %34 = vector.extract %33[0, 0, 0] : f32 from vector<1x1x1xf32>
    %c0_9 = arith.constant 0 : index
    %c0_10 = arith.constant 0 : index
    %35 = memref.load %arg3[%c0_9, %c0_10] : memref<1x4xf32, #tpu.memory_space<smem>>
    memref.store %34, %arg3[%c0_9, %c0_10] : memref<1x4xf32, #tpu.memory_space<smem>>
    %36 = arith.subf %28, %34 : f32
    %c0_11 = arith.constant 0 : index
    %c1 = arith.constant 1 : index
    %37 = memref.load %arg3[%c0_11, %c1] : memref<1x4xf32, #tpu.memory_space<smem>>
    memref.store %36, %arg3[%c0_11, %c1] : memref<1x4xf32, #tpu.memory_space<smem>>
    %38 = vector.extract_strided_slice %2 {offsets = [0, 6], sizes = [2, 42], strides = [1, 1]} : vector<2x48xf32> to vector<2x42xf32>
    %39 = vector.extract_strided_slice %2 {offsets = [0, 0], sizes = [2, 42], strides = [1, 1]} : vector<2x48xf32> to vector<2x42xf32>
    %40 = arith.subf %38, %39 : vector<2x42xf32>
    %41 = math.absf %40 : vector<2x42xf32>
    %cst_12 = arith.constant dense<0.000000e+00> : vector<42xf32>
    %42 = vector.multi_reduction <add>, %41, %cst_12 [0] : vector<2x42xf32> to vector<42xf32>
    %43 = vector.shape_cast %42 : vector<42xf32> to vector<1x42xf32>
    %44 = tpu.iota {dimensions = array<i32: 1>} : vector<1x42xi32>
    %c6_i32_13 = arith.constant 6 : i32
    %c0_i32_14 = arith.constant 0 : i32
    %45 = arith.cmpi eq, %c6_i32_13, %c0_i32_14 : i32
    %c1_i32_15 = arith.constant 1 : i32
    %46 = arith.select %45, %c1_i32_15, %c6_i32_13 : i32
    %47 = vector.broadcast %46 : i32 to vector<1x42xi32>
    %48 = arith.remsi %44, %47 : vector<1x42xi32>
    %c0_i32_16 = arith.constant 0 : i32
    %49 = vector.broadcast %c0_i32_16 : i32 to vector<1x42xi32>
    %50 = arith.cmpi ne, %48, %49 : vector<1x42xi32>
    %c0_i32_17 = arith.constant 0 : i32
    %51 = vector.broadcast %c0_i32_17 : i32 to vector<1x42xi32>
    %52 = arith.cmpi slt, %48, %51 : vector<1x42xi32>
    %c0_i32_18 = arith.constant 0 : i32
    %53 = arith.cmpi slt, %46, %c0_i32_18 : i32
    %54 = vector.broadcast %53 : i1 to vector<1x42xi1>
    %55 = vector.broadcast %54 : vector<1x42xi1> to vector<1x42xi1>
    %56 = arith.xori %52, %55 : vector<1x42xi1>
    %57 = arith.andi %56, %50 : vector<1x42xi1>
    %58 = vector.broadcast %46 : i32 to vector<1x42xi32>
    %59 = arith.addi %48, %58 : vector<1x42xi32>
    %60 = arith.select %57, %59, %48 : vector<1x42xi1>, vector<1x42xi32>
    %c3_i32_19 = arith.constant 3 : i32
    %61 = vector.broadcast %c3_i32_19 : i32 to vector<1x42xi32>
    %62 = arith.cmpi slt, %60, %61 : vector<1x42xi32>
    %63 = vector.shape_cast %43 : vector<1x42xf32> to vector<1x1x42xf32>
    %cst_20 = arith.constant dense<0.000000e+00> : vector<1xf32>
    %64 = vector.multi_reduction <add>, %63, %cst_20 [1, 2] : vector<1x1x42xf32> to vector<1xf32>
    %65 = vector.shape_cast %64 : vector<1xf32> to vector<1x1x1xf32>
    %66 = vector.extract %65[0, 0, 0] : f32 from vector<1x1x1xf32>
    %cst_21 = arith.constant 0.000000e+00 : f32
    %67 = vector.broadcast %cst_21 : f32 to vector<1x42xf32>
    %68 = arith.select %62, %43, %67 : vector<1x42xi1>, vector<1x42xf32>
    %69 = vector.shape_cast %68 : vector<1x42xf32> to vector<1x1x42xf32>
    %cst_22 = arith.constant dense<0.000000e+00> : vector<1xf32>
    %70 = vector.multi_reduction <add>, %69, %cst_22 [1, 2] : vector<1x1x42xf32> to vector<1xf32>
    %71 = vector.shape_cast %70 : vector<1xf32> to vector<1x1x1xf32>
    %72 = vector.extract %71[0, 0, 0] : f32 from vector<1x1x1xf32>
    %c0_23 = arith.constant 0 : index
    %c2 = arith.constant 2 : index
    %73 = memref.load %arg3[%c0_23, %c2] : memref<1x4xf32, #tpu.memory_space<smem>>
    memref.store %72, %arg3[%c0_23, %c2] : memref<1x4xf32, #tpu.memory_space<smem>>
    %74 = arith.subf %66, %72 : f32
    %c0_24 = arith.constant 0 : index
    %c3 = arith.constant 3 : index
    %75 = memref.load %arg3[%c0_24, %c3] : memref<1x4xf32, #tpu.memory_space<smem>>
    memref.store %74, %arg3[%c0_24, %c3] : memref<1x4xf32, #tpu.memory_space<smem>>
    return
  }
  func.func @transform_0(%arg0: i32) -> (i32, i32) {
    %c0_i32 = arith.constant 0 : i32
    %c0_i32_0 = arith.constant 0 : i32
    return %arg0, %c0_i32 : i32, i32
  }
  func.func @transform_1(%arg0: i32) -> (i32, i32) {
    %c0_i32 = arith.constant 0 : i32
    %c0_i32_0 = arith.constant 0 : i32
    return %arg0, %c0_i32 : i32, i32
  }
  func.func @transform_2(%arg0: i32) -> (i32, i32) {
    %c0_i32 = arith.constant 0 : i32
    %c0_i32_0 = arith.constant 0 : i32
    return %arg0, %c0_i32 : i32, i32
  }
}

</mosaic_0001>

<llo_original>
// kernel: mapnet_criterion.1
$region0: #{mapnet_criterion.1}
  #allocation0 [shape = 'u32[]', space=smem, size = 0x4, offset = 0x4, fixed_abs, tag = 'smem constant byte address 0x4 - core index']
  #allocation1 [shape = 'u32[144,128]{1,0:T(1,128)}', space=vmem, size = 0x12000, scoped, tag = 'internal scratch']
  %s0 = inlined_call_operand.vmem [shape: f32[2,48], index: 0, kind: input, shape index: {}]
  %s1 = inlined_call_operand.vmem [shape: f32[2,48], index: 1, kind: input, shape index: {}]
  %s2 = inlined_call_operand.vmem [shape: f32[1,4], index: 2, kind: output, shape index: {}]
  %s3 = sld [smem:[#allocation0]]
  $region18: #{mapnet_criterion.1} parent=0
    _
  %s5 = ssub.s32 1, %s3
  %s6 = scalar_select 0, %s5, %s3
  $region1: #{mapnet_criterion.1} parent=0
    #allocation2 [shape = 'u8[512]{0}', space=smem, size = 0x200, scoped, tag = 'output window, operand 0, single buffered']
    #allocation3 [shape = 's32[1]{0}', space=sflag, size = 0x4, scoped, tag = 'scoped memory for mapnet_criterion.1']
    %7 = vsyncpa [#allocation3], 0
    // Predicated region
    $region2: #{mapnet_criterion.1} parent=1 // pred_check
      _
    $region3: #{mapnet_criterion.1} parent=1 // pred_check_branch
      %9 = sbr.rel (0) target = $region5
    $region4: #{mapnet_criterion.1} parent=1 // pred_region
      _
    $region5: #{mapnet_criterion.1} parent=1 // pred_fallthru
      _
    // Predicated region
    $region6: #{mapnet_criterion.1} parent=1 // pred_check
      _
    $region7: #{mapnet_criterion.1} parent=1 // pred_check_branch
      %11 = sbr.rel (0) target = $region9
    $region8: #{mapnet_criterion.1} parent=1 // pred_region
      _
    $region9: #{mapnet_criterion.1} parent=1 // pred_fallthru
      _
    %v12 = vld [vmem:[%s0] sm:$0x3]
    %v13 = vld [vmem:[%s1] sm:$0x3]
    %v14 = vsub.f32 %v12, %v13
    %v15 = vand.u32 2147483647, %v14
    %vm16 = vcmask 386048
    %v17 = vsel %vm16, %v15, 0.0
    %v18 = vrot.slane %v17, 4
    %v19 = vadd.f32 %v17, %v18
    %v20 = vrot.slane %v19, 2
    %v21 = vadd.f32 %v19, %v20
    %v22 = vrot.slane %v21, 1
    %v23 = vadd.f32 %v21, %v22
    %v24 = vlaneseq
    %v25 = vand.u32 %v24, 127
    %vm26 = vcmp.lt.s32.totalorder %v25, 0
    %v27 = vsub.s32 0, %v25
    %v28 = vsel %vm26, %v27, %v25
    %v29 = vmul.u32.u64.compose %v28, 2863311531
    %v30 = vextract.low.u32 %v29
    %v31 = vextract.high.u32 %v29
    %v32 = vshrl.u32 %v31, 2
    %v33 = vmul.u32 %v32, 6
    %v34 = vsub.s32 %v28, %v33
    %v35 = vsub.s32 0, %v34
    %v36 = vsel %vm26, %v35, %v34
    %vm37 = vcmp.ne.s32.totalorder %v36, 0
    %vm38 = vcmp.lt.s32.totalorder %v36, 0
    %vm39 = vmand %vm38, %vm37
    %v40 = vadd.s32 %v36, 6
    %v41 = vsel %vm39, %v40, %v36
    %vm42 = vcmp.lt.s32.totalorder %v41, 3
    %vm43 = vcmask 385024
    %v44 = vsel %vm43, %v23, 0.0
    %45 = vadd.xlane.f32.xlu0 %v44
    %v46 = vpop.xlane.xlu0 %45
    %v47 = vrot.slane %v46, 4
    %v48 = vadd.f32 %v46, %v47
    %v49 = vrot.slane %v48, 2
    %v50 = vadd.f32 %v48, %v49
    %v51 = vrot.slane %v50, 1
    %v52 = vadd.f32 %v50, %v51
    %s53 = vtos %v52
    %v54 = vsel %vm42, %v23, 0.0
    %v55 = vsel %vm43, %v54, 0.0
    %56 = vadd.xlane.f32.xlu0 %v55
    %v57 = vpop.xlane.xlu0 %56
    %v58 = vrot.slane %v57, 4
    %v59 = vadd.f32 %v57, %v58
    %v60 = vrot.slane %v59, 2
    %v61 = vadd.f32 %v59, %v60
    %v62 = vrot.slane %v61, 1
    %v63 = vadd.f32 %v61, %v62
    %s64 = vtos %v63
    %s65 = scalar_lea.smem [#allocation2], 0
    %66 = sst [smem:[%s65]] %s64
    %s67 = ssub.f32 %s53, %s64
    %s68 = scalar_lea.smem [#allocation2], 1
    %69 = sst [smem:[%s68]] %s67
    %71 = vrot.lane.b32.xlu0 %v14, 6
    %v72 = vpop.permute.xlu0 %71
    %v74 = vsub.f32 %v14, %v72
    %v75 = vand.u32 2147483647, %v74
    %vm76 = vcmask 386096
    %v77 = vsel %vm76, %v75, 0.0
    %v78 = vrot.slane %v77, 4
    %v79 = vadd.f32 %v77, %v78
    %v80 = vrot.slane %v79, 2
    %v81 = vadd.f32 %v79, %v80
    %v82 = vrot.slane %v81, 1
    %v83 = vadd.f32 %v81, %v82
    %85 = vrot.lane.b32.xlu0 %v83, 122
    %v86 = vpop.permute.xlu0 %85
    %vm88 = vcmask 335872
    %v89 = vsel %vm88, %v86, 0.0
    %90 = vadd.xlane.f32.xlu0 %v89
    %v91 = vpop.xlane.xlu0 %90
    %v92 = vrot.slane %v91, 4
    %v93 = vadd.f32 %v91, %v92
    %v94 = vrot.slane %v93, 2
    %v95 = vadd.f32 %v93, %v94
    %v96 = vrot.slane %v95, 1
    %v97 = vadd.f32 %v95, %v96
    %s98 = vtos %v97
    %v99 = vsel %vm42, %v86, 0.0
    %v100 = vsel %vm88, %v99, 0.0
    %101 = vadd.xlane.f32.xlu0 %v100
    %v102 = vpop.xlane.xlu0 %101
    %v103 = vrot.slane %v102, 4
    %v104 = vadd.f32 %v102, %v103
    %v105 = vrot.slane %v104, 2
    %v106 = vadd.f32 %v104, %v105
    %v107 = vrot.slane %v106, 1
    %v108 = vadd.f32 %v106, %v107
    %s109 = vtos %v108
    %s110 = scalar_lea.smem [#allocation2], 2
    %111 = sst [smem:[%s110]] %s109
    %s112 = ssub.f32 %s98, %s109
    %s113 = scalar_lea.smem [#allocation2], 3
    %114 = sst [smem:[%s113]] %s112
    // Predicated region
    $region10: #{mapnet_criterion.1} parent=1 // pred_check
      _
    $region11: #{mapnet_criterion.1} parent=1 // pred_check_branch
      %116 = sbr.rel (0) target = $region13
    $region12: #{mapnet_criterion.1} parent=1 // pred_region
      %s118 = ssub.s32 16, 16
      %119 = vsyncadd [#allocation3], %s118
      %s121 = sshll.u32 %s2, 4
      %s122 = int_to_ptr.vmem [resolvable:$true] %s121
      %124 = dma.smem_to_vmem [#allocation2], 16, %s122, [#allocation3]
    $region13: #{mapnet_criterion.1} parent=1 // pred_fallthru
      _
    // Predicated region
    $region14: #{mapnet_criterion.1} parent=1 // pred_check
      _
    $region15: #{mapnet_criterion.1} parent=1 // pred_check_branch
      %126 = sbr.rel (0) target = $region17
    $region16: #{mapnet_criterion.1} parent=1 // pred_region
      %127 = dma.done [#allocation3], 16
    $region17: #{mapnet_criterion.1} parent=1 // pred_fallthru
      _
    %128 = sfence
    %129 = vsyncpa [#allocation3], 1

</llo_original>
